<compile_context>
chip_gen: v6e
topology: v6e:2x2x1
jax: 0.10.0
libtpu: 0.0.40
codegen_flags: <defaults>
</compile_context>

<pallas_src>
import jax
import jax.numpy as jnp
from jax.experimental import pallas as pl
from jax.experimental.pallas import tpu as pltpu


def _round_up(n, m):
    return ((n + m - 1) // m) * m


def _pad2(a, rows, cols):
    return jnp.pad(a, ((0, rows - a.shape[0]), (0, cols - a.shape[1])))


# ---------------------------------------------------------------------------
# Kernel body: one batch tile per grid step. bf16 MXU inputs, f32 accumulation,
# f32 bias-add + ReLU epilogue, bf16 re-cast before the next MXU pass.
# ---------------------------------------------------------------------------
def dense_net_residual_kernel(x_ref,
                              w1_ref, b1_ref,
                              w2_ref, b2_ref,
                              w3_ref, b3_ref,
                              w4_ref, b4_ref,
                              o_ref):
    x = x_ref[...]                                   # (TB, in_dim) bf16

    h = jnp.dot(x, w1_ref[...], preferred_element_type=jnp.float32) + b1_ref[...]
    h = jnp.maximum(h, 0.0).astype(jnp.bfloat16)
    h = jnp.dot(h, w2_ref[...], preferred_element_type=jnp.float32) + b2_ref[...]
    h = jnp.maximum(h, 0.0).astype(jnp.bfloat16)
    h = jnp.dot(h, w3_ref[...], preferred_element_type=jnp.float32) + b3_ref[...]
    h = jnp.maximum(h, 0.0).astype(jnp.bfloat16)
    out = jnp.dot(h, w4_ref[...], preferred_element_type=jnp.float32) + b4_ref[...]

    o_ref[...] = out.astype(o_ref.dtype)             # lane-dense (out_p % 128 == 0)


# ---------------------------------------------------------------------------
# One-time parameter preparation (hoisted pad + bf16 cast).  Cache the result
# across forward calls so the kernel's weight DMA is the only weight read.
# Weights are stored (in, out); biases (1, out).  (PyTorch checkpoints store
# weights (out, in) — transpose when loading.)
# ---------------------------------------------------------------------------
def prepare_params(params):
    in_dim, d1 = params["w1"].shape
    d2 = params["w2"].shape[1]
    d3 = params["w3"].shape[1]
    out_dim = params["w4"].shape[1]

    d1_p = _round_up(d1, 128)
    d2_p = _round_up(d2, 128)
    d3_p = _round_up(d3, 128)
    out_p = _round_up(out_dim, 128)

    # Zero-padded rows/cols and zero biases never perturb the real outputs.
    prepared = {
        "w1": _pad2(params["w1"], in_dim, d1_p).astype(jnp.bfloat16),
        "w2": _pad2(params["w2"], d1_p, d2_p).astype(jnp.bfloat16),
        "w3": _pad2(params["w3"], d2_p, d3_p).astype(jnp.bfloat16),
        "w4": _pad2(params["w4"], d3_p, out_p).astype(jnp.bfloat16),
        "b1": _pad2(params["b1"], 1, d1_p).astype(jnp.float32),
        "b2": _pad2(params["b2"], 1, d2_p).astype(jnp.float32),
        "b3": _pad2(params["b3"], 1, d3_p).astype(jnp.float32),
        "b4": _pad2(params["b4"], 1, out_p).astype(jnp.float32),
    }
    dims = {"in_dim": in_dim, "out_dim": out_dim,
            "d1_p": d1_p, "d2_p": d2_p, "d3_p": d3_p, "out_p": out_p}
    return prepared, dims


def _physical_vmem_bytes():
    try:
        return int(pltpu.get_tpu_info().vmem_capacity_bytes)
    except Exception:
        return 64 * 1024 * 1024   # v7x per-TensorCore worst case


def _kernel_vmem_bytes(tb, in_dim, d1_p, d2_p, d3_p, out_p, w_bytes, b_bytes):
    # Single-buffered weights/biases + double-buffered x/out tiles + f32/bf16
    # activation temporaries.
    x_buf = 2 * tb * in_dim * 2
    o_buf = 2 * tb * out_p * 4
    act_f32 = tb * (d1_p + d2_p + d3_p + out_p) * 4
    act_bf16 = tb * (d1_p + d2_p + d3_p) * 2
    return w_bytes + b_bytes + x_buf + o_buf + act_f32 + act_bf16


# ---------------------------------------------------------------------------
# Forward pass.  `prepared`, `dims` come from prepare_params (cache them).
# ---------------------------------------------------------------------------
def dense_net_residual(x, prepared, dims, *, batch_tile=512):
    B, in_dim = x.shape
    assert in_dim == dims["in_dim"]
    d1_p, d2_p, d3_p, out_p = dims["d1_p"], dims["d2_p"], dims["d3_p"], dims["out_p"]
    out_dim = dims["out_dim"]

    w_bytes = sum(prepared[k].size for k in ("w1", "w2", "w3", "w4")) * 2
    b_bytes = sum(prepared[k].size for k in ("b1", "b2", "b3", "b4")) * 4

    # Per-generation VMEM budget (leave headroom for Mosaic internal scratch).
    phys_vmem = _physical_vmem_bytes()
    budget = phys_vmem - (8 << 20)

    # Batch tile: multiple of 16 sublanes (bf16 packing), shrunk until the
    # estimated footprint fits the budget.
    TB = min(_round_up(batch_tile, 16), _round_up(B, 16))
    while (TB > 16 and
           _kernel_vmem_bytes(TB, in_dim, d1_p, d2_p, d3_p, out_p,
                              w_bytes, b_bytes) > budget):
        TB = max(16, _round_up(TB // 2, 16))

    need = _kernel_vmem_bytes(TB, in_dim, d1_p, d2_p, d3_p, out_p,
                              w_bytes, b_bytes)
    vmem_limit = int(min(max(need + (8 << 20), 32 << 20), phys_vmem - (4 << 20)))

    B_p = _round_up(B, TB)
    grid = (B_p // TB,)

    # Only pad the batch dim of x; last dim stays in_dim (full-dim block is
    # legal and avoids 4x lane-padded HBM traffic when in_dim << 128).
    x_p = jnp.pad(x, ((0, B_p - B), (0, 0))).astype(jnp.bfloat16)

    # Grid-invariant weights/biases: single-buffered residents.
    const = lambda arr: pl.BlockSpec(arr.shape, lambda i: (0, 0),
                                     pipeline_mode=pl.Buffered(1))
    in_specs = [
        pl.BlockSpec((TB, in_dim), lambda i: (i, 0)),      # batch-tiled input
        const(prepared["w1"]), const(prepared["b1"]),
        const(prepared["w2"]), const(prepared["b2"]),
        const(prepared["w3"]), const(prepared["b3"]),
        const(prepared["w4"]), const(prepared["b4"]),
    ]
    out_spec = pl.BlockSpec((TB, out_p), lambda i: (i, 0))

    flops = 2 * B_p * (in_dim * d1_p + d1_p * d2_p + d2_p * d3_p + d3_p * out_p)
    bytes_accessed = (
        x_p.size * 2                 # streamed input
        + w_bytes + b_bytes          # weights/biases read once (grid-invariant)
        + B_p * out_p * 4            # output writeback
    )

    out_padded = pl.pallas_call(
        dense_net_residual_kernel,
        out_shape=jax.ShapeDtypeStruct((B_p, out_p), jnp.float32),
        grid_spec=pltpu.PrefetchScalarGridSpec(
            num_scalar_prefetch=0,
            grid=grid,
            in_specs=in_specs,
            out_specs=out_spec,
        ),
        compiler_params=pltpu.CompilerParams(
            dimension_semantics=("parallel",),     # megacore sharding on v7x
            vmem_limit_bytes=vmem_limit,
        ),
        cost_estimate=pl.CostEstimate(
            flops=flops, transcendentals=0, bytes_accessed=bytes_accessed),
    )(x_p,
      prepared["w1"], prepared["b1"],
      prepared["w2"], prepared["b2"],
      prepared["w3"], prepared["b3"],
      prepared["w4"], prepared["b4"])

    return out_padded[:B, :out_dim]


# ---------------------------------------------------------------------------
# Synthetic params + pure-JAX reference for correctness checking.
# ---------------------------------------------------------------------------
def init_params(key, in_dim, out_dim, units):
    dims = [(in_dim, units), (units, units * 2), (units * 2, units * 4),
            (units * 4, out_dim)]
    params = {}
    for idx, (di, do) in enumerate(dims, start=1):
        key, kw, kb = jax.random.split(key, 3)
        scale = 1.0 / jnp.sqrt(di)
        params[f"w{idx}"] = jax.random.uniform(
            kw, (di, do), jnp.float32, -scale, scale)
        params[f"b{idx}"] = jax.random.uniform(
            kb, (1, do), jnp.float32, -scale, scale)
    return params


def reference_forward(x, params):
    # Matches the kernel's numerics: bf16 matmul inputs, f32 accumulation.
    def mm(a, w):
        return jnp.dot(a.astype(jnp.bfloat16), w.astype(jnp.bfloat16),
                       preferred_element_type=jnp.float32)
    h = jnp.maximum(mm(x, params["w1"]) + params["b1"], 0.0)
    h = jnp.maximum(mm(h, params["w2"]) + params["b2"], 0.0)
    h = jnp.maximum(mm(h, params["w3"]) + params["b3"], 0.0)
    return mm(h, params["w4"]) + params["b4"]


if __name__ == "__main__":
    B, in_dim, out_dim, units = 64, 32, 16, 32
    key = jax.random.PRNGKey(0)
    key, kx = jax.random.split(key)
    x = jax.random.normal(kx, (B, in_dim), jnp.float32)
    params = init_params(key, in_dim, out_dim, units)

    # One-time pad/cast of the weights (cache across forward calls).
    prepared, dims = prepare_params(params)

    # batch_tile=16 -> grid=(4,) so tiling/pipelining is actually exercised.
    out = dense_net_residual(x, prepared, dims, batch_tile=16)
    out = jax.block_until_ready(out)

    ref = reference_forward(x, params)
    assert out.shape == (B, out_dim)
    assert jnp.allclose(out, ref, atol=2e-3, rtol=2e-3)
    print("KERNEL_OK")
</pallas_src>

<mosaic_0001>
module attributes {stable_mosaic.version = 11 : i64} {
  func.func @dense_net_residual_kernel(%arg0: i32, %arg1: memref<16x32xbf16, #tpu.memory_space<vmem>>, %arg2: memref<32x128xbf16, #tpu.memory_space<vmem>>, %arg3: memref<1x128xf32, #tpu.memory_space<vmem>>, %arg4: memref<128x128xbf16, #tpu.memory_space<vmem>>, %arg5: memref<1x128xf32, #tpu.memory_space<vmem>>, %arg6: memref<128x128xbf16, #tpu.memory_space<vmem>>, %arg7: memref<1x128xf32, #tpu.memory_space<vmem>>, %arg8: memref<128x128xbf16, #tpu.memory_space<vmem>>, %arg9: memref<1x128xf32, #tpu.memory_space<vmem>>, %arg10: memref<16x128xf32, #tpu.memory_space<vmem>>) attributes {dimension_semantics = [#tpu.dimension_semantics<parallel>], iteration_bounds = array<i64: 4>, scalar_prefetch = 0 : i64, scratch_operands = 0 : i64, tpu.core_type = #tpu.core_type<tc>, window_params = [{transform_indices = @transform_0, window_bounds = array<i64: 16, 32>}, {pipeline_mode = #tpu.pipeline_mode<synchronous>, transform_indices = @transform_1, window_bounds = array<i64: 32, 128>}, {pipeline_mode = #tpu.pipeline_mode<synchronous>, transform_indices = @transform_2, window_bounds = array<i64: 1, 128>}, {pipeline_mode = #tpu.pipeline_mode<synchronous>, transform_indices = @transform_3, window_bounds = array<i64: 128, 128>}, {pipeline_mode = #tpu.pipeline_mode<synchronous>, transform_indices = @transform_4, window_bounds = array<i64: 1, 128>}, {pipeline_mode = #tpu.pipeline_mode<synchronous>, transform_indices = @transform_5, window_bounds = array<i64: 128, 128>}, {pipeline_mode = #tpu.pipeline_mode<synchronous>, transform_indices = @transform_6, window_bounds = array<i64: 1, 128>}, {pipeline_mode = #tpu.pipeline_mode<synchronous>, transform_indices = @transform_7, window_bounds = array<i64: 128, 128>}, {pipeline_mode = #tpu.pipeline_mode<synchronous>, transform_indices = @transform_8, window_bounds = array<i64: 1, 128>}, {transform_indices = @transform_9, window_bounds = array<i64: 16, 128>}]} {
    %c0 = arith.constant 0 : index
    %c0_0 = arith.constant 0 : index
    %0 = vector.load %arg1[%c0, %c0_0] : memref<16x32xbf16, #tpu.memory_space<vmem>>, vector<16x32xbf16>
    %c0_1 = arith.constant 0 : index
    %c0_2 = arith.constant 0 : index
    %1 = vector.load %arg2[%c0_1, %c0_2] : memref<32x128xbf16, #tpu.memory_space<vmem>>, vector<32x128xbf16>
    %cst = arith.constant dense<0.000000e+00> : vector<16x128xf32>
    %2 = tpu.matmul %0, %1, %cst {dimension_numbers = #tpu.dot_dimension_numbers<[1], [0], [0], [1], [0, 0, 1, 1], [], []>} : vector<16x32xbf16>, vector<32x128xbf16>, vector<16x128xf32> -> vector<16x128xf32>
    %c0_3 = arith.constant 0 : index
    %c0_4 = arith.constant 0 : index
    %3 = vector.load %arg3[%c0_3, %c0_4] : memref<1x128xf32, #tpu.memory_space<vmem>>, vector<1x128xf32>
    %4 = vector.broadcast %3 : vector<1x128xf32> to vector<16x128xf32>
    %5 = arith.addf %2, %4 : vector<16x128xf32>
    %cst_5 = arith.constant 0.000000e+00 : f32
    %6 = vector.broadcast %cst_5 : f32 to vector<16x128xf32>
    %7 = arith.maximumf %5, %6 : vector<16x128xf32>
    %8 = arith.truncf %7 : vector<16x128xf32> to vector<16x128xbf16>
    %c0_6 = arith.constant 0 : index
    %c0_7 = arith.constant 0 : index
    %9 = vector.load %arg4[%c0_6, %c0_7] : memref<128x128xbf16, #tpu.memory_space<vmem>>, vector<128x128xbf16>
    %cst_8 = arith.constant dense<0.000000e+00> : vector<16x128xf32>
    %10 = tpu.matmul %8, %9, %cst_8 {dimension_numbers = #tpu.dot_dimension_numbers<[1], [0], [0], [1], [0, 0, 1, 1], [], []>} : vector<16x128xbf16>, vector<128x128xbf16>, vector<16x128xf32> -> vector<16x128xf32>
    %c0_9 = arith.constant 0 : index
    %c0_10 = arith.constant 0 : index
    %11 = vector.load %arg5[%c0_9, %c0_10] : memref<1x128xf32, #tpu.memory_space<vmem>>, vector<1x128xf32>
    %12 = vector.broadcast %11 : vector<1x128xf32> to vector<16x128xf32>
    %13 = arith.addf %10, %12 : vector<16x128xf32>
    %cst_11 = arith.constant 0.000000e+00 : f32
    %14 = vector.broadcast %cst_11 : f32 to vector<16x128xf32>
    %15 = arith.maximumf %13, %14 : vector<16x128xf32>
    %16 = arith.truncf %15 : vector<16x128xf32> to vector<16x128xbf16>
    %c0_12 = arith.constant 0 : index
    %c0_13 = arith.constant 0 : index
    %17 = vector.load %arg6[%c0_12, %c0_13] : memref<128x128xbf16, #tpu.memory_space<vmem>>, vector<128x128xbf16>
    %cst_14 = arith.constant dense<0.000000e+00> : vector<16x128xf32>
    %18 = tpu.matmul %16, %17, %cst_14 {dimension_numbers = #tpu.dot_dimension_numbers<[1], [0], [0], [1], [0, 0, 1, 1], [], []>} : vector<16x128xbf16>, vector<128x128xbf16>, vector<16x128xf32> -> vector<16x128xf32>
    %c0_15 = arith.constant 0 : index
    %c0_16 = arith.constant 0 : index
    %19 = vector.load %arg7[%c0_15, %c0_16] : memref<1x128xf32, #tpu.memory_space<vmem>>, vector<1x128xf32>
    %20 = vector.broadcast %19 : vector<1x128xf32> to vector<16x128xf32>
    %21 = arith.addf %18, %20 : vector<16x128xf32>
    %cst_17 = arith.constant 0.000000e+00 : f32
    %22 = vector.broadcast %cst_17 : f32 to vector<16x128xf32>
    %23 = arith.maximumf %21, %22 : vector<16x128xf32>
    %24 = arith.truncf %23 : vector<16x128xf32> to vector<16x128xbf16>
    %c0_18 = arith.constant 0 : index
    %c0_19 = arith.constant 0 : index
    %25 = vector.load %arg8[%c0_18, %c0_19] : memref<128x128xbf16, #tpu.memory_space<vmem>>, vector<128x128xbf16>
    %cst_20 = arith.constant dense<0.000000e+00> : vector<16x128xf32>
    %26 = tpu.matmul %24, %25, %cst_20 {dimension_numbers = #tpu.dot_dimension_numbers<[1], [0], [0], [1], [0, 0, 1, 1], [], []>} : vector<16x128xbf16>, vector<128x128xbf16>, vector<16x128xf32> -> vector<16x128xf32>
    %c0_21 = arith.constant 0 : index
    %c0_22 = arith.constant 0 : index
    %27 = vector.load %arg9[%c0_21, %c0_22] : memref<1x128xf32, #tpu.memory_space<vmem>>, vector<1x128xf32>
    %28 = vector.broadcast %27 : vector<1x128xf32> to vector<16x128xf32>
    %29 = arith.addf %26, %28 : vector<16x128xf32>
    %c0_23 = arith.constant 0 : index
    %c0_24 = arith.constant 0 : index
    %30 = vector.load %arg10[%c0_23, %c0_24] : memref<16x128xf32, #tpu.memory_space<vmem>>, vector<16x128xf32>
    tpu.vector_store %arg10[%c0_23, %c0_24], %29 {strides = array<i32>} : memref<16x128xf32, #tpu.memory_space<vmem>>, vector<16x128xf32>,
    return
  }
  func.func @transform_0(%arg0: i32) -> (i32, i32) {
    %c0_i32 = arith.constant 0 : i32
    %c0_i32_0 = arith.constant 0 : i32
    return %arg0, %c0_i32 : i32, i32
  }
  func.func @transform_1(%arg0: i32) -> (i32, i32) {
    %c0_i32 = arith.constant 0 : i32
    %c0_i32_0 = arith.constant 0 : i32
    %c0_i32_1 = arith.constant 0 : i32
    return %c0_i32, %c0_i32_0 : i32, i32
  }
  func.func @transform_2(%arg0: i32) -> (i32, i32) {
    %c0_i32 = arith.constant 0 : i32
    %c0_i32_0 = arith.constant 0 : i32
    %c0_i32_1 = arith.constant 0 : i32
    return %c0_i32, %c0_i32_0 : i32, i32
  }
  func.func @transform_3(%arg0: i32) -> (i32, i32) {
    %c0_i32 = arith.constant 0 : i32
    %c0_i32_0 = arith.constant 0 : i32
    %c0_i32_1 = arith.constant 0 : i32
    return %c0_i32, %c0_i32_0 : i32, i32
  }
  func.func @transform_4(%arg0: i32) -> (i32, i32) {
    %c0_i32 = arith.constant 0 : i32
    %c0_i32_0 = arith.constant 0 : i32
    %c0_i32_1 = arith.constant 0 : i32
    return %c0_i32, %c0_i32_0 : i32, i32
  }
  func.func @transform_5(%arg0: i32) -> (i32, i32) {
    %c0_i32 = arith.constant 0 : i32
    %c0_i32_0 = arith.constant 0 : i32
    %c0_i32_1 = arith.constant 0 : i32
    return %c0_i32, %c0_i32_0 : i32, i32
  }
  func.func @transform_6(%arg0: i32) -> (i32, i32) {
    %c0_i32 = arith.constant 0 : i32
    %c0_i32_0 = arith.constant 0 : i32
    %c0_i32_1 = arith.constant 0 : i32
    return %c0_i32, %c0_i32_0 : i32, i32
  }
  func.func @transform_7(%arg0: i32) -> (i32, i32) {
    %c0_i32 = arith.constant 0 : i32
    %c0_i32_0 = arith.constant 0 : i32
    %c0_i32_1 = arith.constant 0 : i32
    return %c0_i32, %c0_i32_0 : i32, i32
  }
  func.func @transform_8(%arg0: i32) -> (i32, i32) {
    %c0_i32 = arith.constant 0 : i32
    %c0_i32_0 = arith.constant 0 : i32
    %c0_i32_1 = arith.constant 0 : i32
    return %c0_i32, %c0_i32_0 : i32, i32
  }
  func.func @transform_9(%arg0: i32) -> (i32, i32) {
    %c0_i32 = arith.constant 0 : i32
    %c0_i32_0 = arith.constant 0 : i32
    return %arg0, %c0_i32 : i32, i32
  }
}

</mosaic_0001>

<llo_original>
// kernel: tpu_custom_call.1
$region0: #{tpu_custom_call.1}
  #allocation0 [shape = 'u32[]', space=smem, size = 0x4, offset = 0x4, fixed_abs, tag = 'smem constant byte address 0x4 - core index']
  #allocation1 [shape = 'u32[144,128]{1,0:T(1,128)}', space=vmem, size = 0x12000, scoped, tag = 'internal scratch']
  %s0 = inlined_call_operand.vmem [shape: bf16[64,32], index: 0, kind: input, shape index: {}]
  %s1 = inlined_call_operand.vmem [shape: bf16[32,128], index: 1, kind: input, shape index: {}]
  %s2 = inlined_call_operand.vmem [shape: f32[1,128], index: 2, kind: input, shape index: {}]
  %s3 = inlined_call_operand.hbm [shape: bf16[128,128], index: 3, kind: input, shape index: {}]
  %s4 = inlined_call_operand.vmem [shape: f32[1,128], index: 4, kind: input, shape index: {}]
  %s5 = inlined_call_operand.hbm [shape: bf16[128,128], index: 5, kind: input, shape index: {}]
  %s6 = inlined_call_operand.vmem [shape: f32[1,128], index: 6, kind: input, shape index: {}]
  %s7 = inlined_call_operand.hbm [shape: bf16[128,128], index: 7, kind: input, shape index: {}]
  %s8 = inlined_call_operand.vmem [shape: f32[1,128], index: 8, kind: input, shape index: {}]
  %s9 = inlined_call_operand.hbm [shape: f32[64,128], index: 9, kind: output, shape index: {}]
  %s10 = sld [smem:[#allocation0]]
  $region81: #{tpu_custom_call.1} parent=0
    _
  %s12 = ssub.s32 1, %s10
  %s13 = scalar_select 0, %s12, %s10
  $region1: #{tpu_custom_call.1} parent=0
    #allocation2 [shape = 'u8[32768]{0}', space=vmem, size = 0x8000, scoped, tag = 'input window, operand 3, single buffered']
    #allocation3 [shape = 's32[2]{0}', space=sflag, size = 0x8, scoped, tag = 'scoped memory for tpu_custom_call.1']
    #allocation4 [shape = 's32[2]{0}', space=sflag, size = 0x8, scoped, tag = 'scoped memory for tpu_custom_call.1']
    #allocation5 [shape = 'u8[32768]{0}', space=vmem, size = 0x8000, scoped, tag = 'input window, operand 5, single buffered']
    #allocation6 [shape = 's32[1]{0}', space=sflag, size = 0x4, scoped, tag = 'scoped memory for tpu_custom_call.1']
    #allocation7 [shape = 'u8[32768]{0}', space=vmem, size = 0x8000, scoped, tag = 'input window, operand 7, single buffered']
    #allocation8 [shape = 'u8[16384]{0}', space=vmem, size = 0x4000, scoped, tag = 'output window, operand 0']
    %14 = vsyncpa [#allocation3], 0
    %15 = vsyncpa [#allocation6], 0
    %16 = vsyncpa [#allocation4], 0
    %s17 = scalar_lea.sflag [#allocation4], 1
    %18 = vsyncpa %s17, 0
    loop: start=0, step=1, limit=6
    $region2: #{tpu_custom_call.1} parent=1 // loop_pre_header
      _
    $region3: #{tpu_custom_call.1} parent=1 // loop_header
      %s20 = sphi 0, %s24
      %p21 = scmp.ge.s32.totalorder %s20, 6
      %s30 = sphi 0, %s32
      %s33 = sphi 0, %s30
      %s34 = sphi 0, %s33
      %s50 = sphi 0, %s34
      %s54 = sphi 0, %s54
      %s56 = sphi 0, %s54
      %s57 = sphi 0, %s56
      %s71 = sphi 0, %s57
      %s75 = sphi 0, %s75
      %s77 = sphi 0, %s75
      %s78 = sphi 0, %s77
      %s92 = sphi 0, %s78
      %s96 = sphi 0, %s96
      %s98 = sphi 0, %s96
      %s99 = sphi 0, %s98
      %s113 = sphi 0, %s99
      %s117 = sphi 0, %s117
      %s119 = sphi 0, %s117
      %s120 = sphi 0, %s119
      %s134 = sphi 0, %s120
      %s138 = sphi 0, %s138
      %s140 = sphi 0, %s138
      %s141 = sphi 0, %s140
      %s155 = sphi 0, %s141
      %s159 = sphi 0, %s159
      %s161 = sphi 0, %s159
      %s162 = sphi 0, %s161
      %s176 = sphi 0, %s162
      %s180 = sphi 0, %s180
      %s182 = sphi 0, %s180
      %s183 = sphi 0, %s182
      %s197 = sphi 0, %s183
      %s201 = sphi 0, %s201
      %s203 = sphi 0, %s201
      %s204 = sphi 0, %s203
      %s218 = sphi 0, %s204
      %s224 = sphi 0, %s226
      %s227 = sphi 0, %s224
      %s228 = sphi 0, %s227
      %s244 = sphi 0, %s228
    $region4: #{tpu_custom_call.1} parent=1 // loop_header_branch
      %23 = sbr.rel (%p21) target = $region8
    $region5: #{tpu_custom_call.1} parent=1 // loop_body
      %s25 = ssub.s32 %s20, 1
      %s26 = ssub.s32 %s20, 2
      %s27 = sadd.s32 %s20, 1
      %s28 = ssub.s32 %s20, %s27
      %p29 = scmp.eq.s32.totalorder %s28, 0
      %s31 = sadd.s32 %s30, 1
      %s32 = scalar_select %p29, %s30, %s31
      %p35 = pneg %p29
      %p36 = scmp.eq.s32.totalorder %s20, 3
      %p37 = por %p35, %p36
      %p38 = scmp.ne.s32.totalorder %s30, %s33
      %p39 = scmp.eq.s32.totalorder %s20, 0
      %p40 = por %p38, %p39
      %p41 = scmp.ne.s32.totalorder %s30, %s33
      %p42 = scmp.eq.s32.totalorder %s25, 3
      %p43 = por %p41, %p42
      %p44 = scmp.ne.s32.totalorder %s33, %s34
      %p45 = scmp.eq.s32.totalorder %s25, 0
      %p46 = por %p44, %p45
      %p47 = scmp.ne.s32.totalorder %s33, %s34
      %p48 = scmp.eq.s32.totalorder %s26, 3
      %p49 = por %p47, %p48
      %p51 = scmp.ne.s32.totalorder %s34, %s50
      %p52 = scmp.eq.s32.totalorder %s26, 0
      %p53 = por %p51, %p52
      %s55 = sadd.s32 %s54, 1
      %p58 = scmp.eq.s32.totalorder %s20, 3
      %p59 = scmp.ne.s32.totalorder %s54, %s56
      %p60 = scmp.eq.s32.totalorder %s20, 0
      %p61 = por %p59, %p60
      %p62 = scmp.ne.s32.totalorder %s54, %s56
      %p63 = scmp.eq.s32.totalorder %s25, 3
      %p64 = por %p62, %p63
      %p65 = scmp.ne.s32.totalorder %s56, %s57
      %p66 = scmp.eq.s32.totalorder %s25, 0
      %p67 = por %p65, %p66
      %p68 = scmp.ne.s32.totalorder %s56, %s57
      %p69 = scmp.eq.s32.totalorder %s26, 3
      %p70 = por %p68, %p69
      %p72 = scmp.ne.s32.totalorder %s57, %s71
      %p73 = scmp.eq.s32.totalorder %s26, 0
      %p74 = por %p72, %p73
      %s76 = sadd.s32 %s75, 1
      %p79 = scmp.eq.s32.totalorder %s20, 3
      %p80 = scmp.ne.s32.totalorder %s75, %s77
      %p81 = scmp.eq.s32.totalorder %s20, 0
      %p82 = por %p80, %p81
      %p83 = scmp.ne.s32.totalorder %s75, %s77
      %p84 = scmp.eq.s32.totalorder %s25, 3
      %p85 = por %p83, %p84
      %p86 = scmp.ne.s32.totalorder %s77, %s78
      %p87 = scmp.eq.s32.totalorder %s25, 0
      %p88 = por %p86, %p87
      %p89 = scmp.ne.s32.totalorder %s77, %s78
      %p90 = scmp.eq.s32.totalorder %s26, 3
      %p91 = por %p89, %p90
      %p93 = scmp.ne.s32.totalorder %s78, %s92
      %p94 = scmp.eq.s32.totalorder %s26, 0
      %p95 = por %p93, %p94
      %s97 = sadd.s32 %s96, 1
      %p100 = scmp.eq.s32.totalorder %s20, 3
      %p101 = scmp.ne.s32.totalorder %s96, %s98
      %p102 = scmp.eq.s32.totalorder %s20, 0
      %p103 = por %p101, %p102
      %p104 = scmp.ne.s32.totalorder %s96, %s98
      %p105 = scmp.eq.s32.totalorder %s25, 3
      %p106 = por %p104, %p105
      %p107 = scmp.ne.s32.totalorder %s98, %s99
      %p108 = scmp.eq.s32.totalorder %s25, 0
      %p109 = por %p107, %p108
      %p110 = scmp.ne.s32.totalorder %s98, %s99
      %p111 = scmp.eq.s32.totalorder %s26, 3
      %p112 = por %p110, %p111
      %p114 = scmp.ne.s32.totalorder %s99, %s113
      %p115 = scmp.eq.s32.totalorder %s26, 0
      %p116 = por %p114, %p115
      %s118 = sadd.s32 %s117, 1
      %p121 = scmp.eq.s32.totalorder %s20, 3
      %p122 = scmp.ne.s32.totalorder %s117, %s119
      %p123 = scmp.eq.s32.totalorder %s20, 0
      %p124 = por %p122, %p123
      %p125 = scmp.ne.s32.totalorder %s117, %s119
      %p126 = scmp.eq.s32.totalorder %s25, 3
      %p127 = por %p125, %p126
      %p128 = scmp.ne.s32.totalorder %s119, %s120
      %p129 = scmp.eq.s32.totalorder %s25, 0
      %p130 = por %p128, %p129
      %p131 = scmp.ne.s32.totalorder %s119, %s120
      %p132 = scmp.eq.s32.totalorder %s26, 3
      %p133 = por %p131, %p132
      %p135 = scmp.ne.s32.totalorder %s120, %s134
      %p136 = scmp.eq.s32.totalorder %s26, 0
      %p137 = por %p135, %p136
      %s139 = sadd.s32 %s138, 1
      %p142 = scmp.eq.s32.totalorder %s20, 3
      %p143 = scmp.ne.s32.totalorder %s138, %s140
      %p144 = scmp.eq.s32.totalorder %s20, 0
      %p145 = por %p143, %p144
      %p146 = scmp.ne.s32.totalorder %s138, %s140
      %p147 = scmp.eq.s32.totalorder %s25, 3
      %p148 = por %p146, %p147
      %p149 = scmp.ne.s32.totalorder %s140, %s141
      %p150 = scmp.eq.s32.totalorder %s25, 0
      %p151 = por %p149, %p150
      %p152 = scmp.ne.s32.totalorder %s140, %s141
      %p153 = scmp.eq.s32.totalorder %s26, 3
      %p154 = por %p152, %p153
      %p156 = scmp.ne.s32.totalorder %s141, %s155
      %p157 = scmp.eq.s32.totalorder %s26, 0
      %p158 = por %p156, %p157
      %s160 = sadd.s32 %s159, 1
      %p163 = scmp.eq.s32.totalorder %s20, 3
      %p164 = scmp.ne.s32.totalorder %s159, %s161
      %p165 = scmp.eq.s32.totalorder %s20, 0
      %p166 = por %p164, %p165
      %p167 = scmp.ne.s32.totalorder %s159, %s161
      %p168 = scmp.eq.s32.totalorder %s25, 3
      %p169 = por %p167, %p168
      %p170 = scmp.ne.s32.totalorder %s161, %s162
      %p171 = scmp.eq.s32.totalorder %s25, 0
      %p172 = por %p170, %p171
      %p173 = scmp.ne.s32.totalorder %s161, %s162
      %p174 = scmp.eq.s32.totalorder %s26, 3
      %p175 = por %p173, %p174
      %p177 = scmp.ne.s32.totalorder %s162, %s176
      %p178 = scmp.eq.s32.totalorder %s26, 0
      %p179 = por %p177, %p178
      %s181 = sadd.s32 %s180, 1
      %p184 = scmp.eq.s32.totalorder %s20, 3
      %p185 = scmp.ne.s32.totalorder %s180, %s182
      %p186 = scmp.eq.s32.totalorder %s20, 0
      %p187 = por %p185, %p186
      %p188 = scmp.ne.s32.totalorder %s180, %s182
      %p189 = scmp.eq.s32.totalorder %s25, 3
      %p190 = por %p188, %p189
      %p191 = scmp.ne.s32.totalorder %s182, %s183
      %p192 = scmp.eq.s32.totalorder %s25, 0
      %p193 = por %p191, %p192
      %p194 = scmp.ne.s32.totalorder %s182, %s183
      %p195 = scmp.eq.s32.totalorder %s26, 3
      %p196 = por %p194, %p195
      %p198 = scmp.ne.s32.totalorder %s183, %s197
      %p199 = scmp.eq.s32.totalorder %s26, 0
      %p200 = por %p198, %p199
      %s202 = sadd.s32 %s201, 1
      %p205 = scmp.eq.s32.totalorder %s20, 3
      %p206 = scmp.ne.s32.totalorder %s201, %s203
      %p207 = scmp.eq.s32.totalorder %s20, 0
      %p208 = por %p206, %p207
      %p209 = scmp.ne.s32.totalorder %s201, %s203
      %p210 = scmp.eq.s32.totalorder %s25, 3
      %p211 = por %p209, %p210
      %p212 = scmp.ne.s32.totalorder %s203, %s204
      %p213 = scmp.eq.s32.totalorder %s25, 0
      %p214 = por %p212, %p213
      %p215 = scmp.ne.s32.totalorder %s203, %s204
      %p216 = scmp.eq.s32.totalorder %s26, 3
      %p217 = por %p215, %p216
      %p219 = scmp.ne.s32.totalorder %s204, %s218
      %p220 = scmp.eq.s32.totalorder %s26, 0
      %p221 = por %p219, %p220
      %s222 = ssub.s32 %s20, %s27
      %p223 = scmp.eq.s32.totalorder %s222, 0
      %s225 = sadd.s32 %s224, 1
      %s226 = scalar_select %p223, %s224, %s225
      %p229 = pneg %p223
      %p230 = scmp.eq.s32.totalorder %s20, 3
      %p231 = por %p229, %p230
      %p232 = scmp.ne.s32.totalorder %s224, %s227
      %p233 = scmp.eq.s32.totalorder %s20, 0
      %p234 = por %p232, %p233
      %p235 = scmp.ne.s32.totalorder %s224, %s227
      %p236 = scmp.eq.s32.totalorder %s25, 3
      %p237 = por %p235, %p236
      %p238 = scmp.ne.s32.totalorder %s227, %s228
      %p239 = scmp.eq.s32.totalorder %s25, 0
      %p240 = por %p238, %p239
      %p241 = scmp.ne.s32.totalorder %s227, %s228
      %p242 = scmp.eq.s32.totalorder %s26, 3
      %p243 = por %p241, %p242
      %p245 = scmp.ne.s32.totalorder %s228, %s244
      %p246 = scmp.eq.s32.totalorder %s26, 0
      %p247 = por %p245, %p246
      %p248 = scmp.le.s32.totalorder 1, %s20
      %p249 = scmp.lt.s32.totalorder %s20, 5
      %p250 = pnand %p248, %p249
      %p251 = pneg %p250
      // Predicated region
      $region9: #{tpu_custom_call.1} parent=5 // pred_check
        _
      $region10: #{tpu_custom_call.1} parent=5 // pred_check_branch
        %253 = sbr.rel (%p250) target = $region12
      $region11: #{tpu_custom_call.1} parent=5 // pred_region
        %s254 = ssub.s32 %s20, 1
        // Predicated region
        $region13: #{tpu_custom_call.1} parent=11 // pred_check
          %p255 = pneg %p67
        $region14: #{tpu_custom_call.1} parent=11 // pred_check_branch
          %257 = sbr.rel (%p255) target = $region16
        $region15: #{tpu_custom_call.1} parent=11 // pred_region
          _
        $region16: #{tpu_custom_call.1} parent=11 // pred_fallthru
          _
        // Predicated region
        $region17: #{tpu_custom_call.1} parent=11 // pred_check
          %p258 = pneg %p88
        $region18: #{tpu_custom_call.1} parent=11 // pred_check_branch
          %260 = sbr.rel (%p258) target = $region20
        $region19: #{tpu_custom_call.1} parent=11 // pred_region
          _
        $region20: #{tpu_custom_call.1} parent=11 // pred_fallthru
          _
        // Predicated region
        $region21: #{tpu_custom_call.1} parent=11 // pred_check
          %p261 = pneg %p109
        $region22: #{tpu_custom_call.1} parent=11 // pred_check_branch
          %263 = sbr.rel (%p261) target = $region24
        $region23: #{tpu_custom_call.1} parent=11 // pred_region
          %s265 = ssub.s32 1024, 1024
          %266 = vsyncadd [#allocation3], %s265
          %s267 = sshll.u32 [#allocation2], 4
          %s268 = int_to_ptr.vmem [resolvable:$true] %s267
          %273 = dma.hbm_to_vmem [thread:$0]  %s3, 1024, %s268, [#allocation3], 64, 64, 4
        $region24: #{tpu_custom_call.1} parent=11 // pred_fallthru
          _
        // Predicated region
        $region25: #{tpu_custom_call.1} parent=11 // pred_check
          %p274 = pneg %p130
        $region26: #{tpu_custom_call.1} parent=11 // pred_check_branch
          %276 = sbr.rel (%p274) target = $region28
        $region27: #{tpu_custom_call.1} parent=11 // pred_region
          _
        $region28: #{tpu_custom_call.1} parent=11 // pred_fallthru
          _
        // Predicated region
        $region29: #{tpu_custom_call.1} parent=11 // pred_check
          %p277 = pneg %p151
        $region30: #{tpu_custom_call.1} parent=11 // pred_check_branch
          %279 = sbr.rel (%p277) target = $region32
        $region31: #{tpu_custom_call.1} parent=11 // pred_region
          %s281 = ssub.s32 1024, 1024
          %282 = vsyncadd [#allocation6], %s281
          %s283 = sshll.u32 [#allocation5], 4
          %s284 = int_to_ptr.vmem [resolvable:$true] %s283
          %289 = dma.hbm_to_vmem [thread:$0]  %s5, 1024, %s284, [#allocation6], 64, 64, 4
        $region32: #{tpu_custom_call.1} parent=11 // pred_fallthru
          _
        // Predicated region
        $region33: #{tpu_custom_call.1} parent=11 // pred_check
          %p290 = pneg %p172
        $region34: #{tpu_custom_call.1} parent=11 // pred_check_branch
          %292 = sbr.rel (%p290) target = $region36
        $region35: #{tpu_custom_call.1} parent=11 // pred_region
          _
        $region36: #{tpu_custom_call.1} parent=11 // pred_fallthru
          _
        // Predicated region
        $region37: #{tpu_custom_call.1} parent=11 // pred_check
          %p293 = pneg %p193
        $region38: #{tpu_custom_call.1} parent=11 // pred_check_branch
          %295 = sbr.rel (%p293) target = $region40
        $region39: #{tpu_custom_call.1} parent=11 // pred_region
          %s297 = ssub.s32 1024, 1024
          %298 = vsyncadd [#allocation6], %s297
          %s299 = sshll.u32 [#allocation7], 4
          %s300 = int_to_ptr.vmem [resolvable:$true] %s299
          %305 = dma.hbm_to_vmem [thread:$0]  %s7, 1024, %s300, [#allocation6], 64, 64, 4
        $region40: #{tpu_custom_call.1} parent=11 // pred_fallthru
          _
        // Predicated region
        $region41: #{tpu_custom_call.1} parent=11 // pred_check
          %p306 = pneg %p214
        $region42: #{tpu_custom_call.1} parent=11 // pred_check_branch
          %308 = sbr.rel (%p306) target = $region44
        $region43: #{tpu_custom_call.1} parent=11 // pred_region
          _
        $region44: #{tpu_custom_call.1} parent=11 // pred_fallthru
          _
      $region12: #{tpu_custom_call.1} parent=5 // pred_fallthru
        _
      %p309 = scmp.lt.s32.totalorder %s20, 4
      // Predicated region
      $region45: #{tpu_custom_call.1} parent=5 // pred_check
        %p310 = pneg %p309
      $region46: #{tpu_custom_call.1} parent=5 // pred_check_branch
        %312 = sbr.rel (%p310) target = $region48
      $region47: #{tpu_custom_call.1} parent=5 // pred_region
        // Predicated region
        $region49: #{tpu_custom_call.1} parent=47 // pred_check
          %p313 = pneg %p40
        $region50: #{tpu_custom_call.1} parent=47 // pred_check_branch
          %315 = sbr.rel (%p313) target = $region52
        $region51: #{tpu_custom_call.1} parent=47 // pred_region
          %s316 = smul.u32 2, %s20
          %p317 = scmp.lt.s32.totalorder %s316, 7
          %s318 = scalar_select %p317, %s316, 7
          %s319 = smul.addr %s318, 4
          %s320 = scalar_lea.vmem %s0, %s319
          %s321 = smul.u32 2, %s20
        $region52: #{tpu_custom_call.1} parent=47 // pred_fallthru
          _
      $region48: #{tpu_custom_call.1} parent=5 // pred_fallthru
        _
      %p322 = scmp.le.s32.totalorder 1, %s20
      %p323 = scmp.lt.s32.totalorder %s20, 5
      %p324 = pnand %p322, %p323
      %p325 = pneg %p324
      // Predicated region
      $region53: #{tpu_custom_call.1} parent=5 // pred_check
        _
      $region54: #{tpu_custom_call.1} parent=5 // pred_check_branch
        %327 = sbr.rel (%p324) target = $region56
      $region55: #{tpu_custom_call.1} parent=5 // pred_region
        %s328 = ssub.s32 %s20, 1
        // Predicated region
        $region57: #{tpu_custom_call.1} parent=55 // pred_check
          %p329 = pneg %p109
        $region58: #{tpu_custom_call.1} parent=55 // pred_check_branch
          %331 = sbr.rel (%p329) target = $region60
        $region59: #{tpu_custom_call.1} parent=55 // pred_region
          %332 = dma.done [#allocation3], 1024
        $region60: #{tpu_custom_call.1} parent=55 // pred_fallthru
          _
        // Predicated region
        $region61: #{tpu_custom_call.1} parent=55 // pred_check
          %p333 = pneg %p151
        $region62: #{tpu_custom_call.1} parent=55 // pred_check_branch
          %335 = sbr.rel (%p333) target = $region64
        $region63: #{tpu_custom_call.1} parent=55 // pred_region
          %336 = dma.done [#allocation6], 1024
        $region64: #{tpu_custom_call.1} parent=55 // pred_fallthru
          _
        // Predicated region
        $region65: #{tpu_custom_call.1} parent=55 // pred_check
          %p337 = pneg %p193
        $region66: #{tpu_custom_call.1} parent=55 // pred_check_branch
          %339 = sbr.rel (%p337) target = $region68
        $region67: #{tpu_custom_call.1} parent=55 // pred_region
          %340 = dma.done [#allocation6], 1024
        $region68: #{tpu_custom_call.1} parent=55 // pred_fallthru
          _
        %s341 = smul.u32 2, %s25
        %p342 = scmp.lt.s32.totalorder %s341, 7
        %s343 = scalar_select %p342, %s341, 7
        %s344 = smul.addr %s343, 4
        %s345 = scalar_lea.vmem %s0, %s344
        %p346 = pneg %p46
        %p347 = pneg %p43
        %p348 = pneg %p67
        %p349 = pneg %p64
        %p350 = pneg %p88
        %p351 = pneg %p85
        %p352 = pneg %p109
        %p353 = pneg %p106
        %p354 = pneg %p130
        %p355 = pneg %p127
        %p356 = pneg %p151
        %p357 = pneg %p148
        %p358 = pneg %p172
        %p359 = pneg %p169
        %p360 = pneg %p193
        %p361 = pneg %p190
        %p362 = pneg %p214
        %p363 = pneg %p211
        %p364 = pneg %p240
        %p365 = pneg %p237
        %s366 = sand.u32 %s227, 1
        %s367 = scalar_lea.sflag [#allocation4], %s366
        %s368 = sand.u32 %s227, 1
        %s369 = smul.addr %s368, 16
        %s370 = scalar_lea.vmem [#allocation8], %s369
        %s371 = smul.u32 2, %s25
        %p372 = scmp.lt.s32.totalorder %s371, 7
        %s373 = scalar_select %p372, %s371, 7
        %s374 = smul.addr %s373, 4
        %s375 = scalar_lea.vmem %s0, %s374
        %s376 = smul.u32 2, %s25
        %s377 = smul.u32 2, %s25
        %v379 = vld [vmem:[%s375] sm:$0xf]
        %v380 = vld [vmem:[%s375 + $0x4] sm:$0xf]
        %v381 = vld [vmem:[%s1] sm:$0xf]
        %v382 = vld [vmem:[%s1 + $0x4] sm:$0xf]
        %v383 = vld [vmem:[%s1 + $0x8] sm:$0xf]
        %v384 = vld [vmem:[%s1 + $0xc] sm:$0xf]
        %v385 = vld [vmem:[%s2] sm:$0x1]
        %v387 = vlaneseq
        %v388 = vshrl.u32 %v387, 7
        %v389 = vsub.s32 0, %v388
        %v390 = vrot.slane %v385, %v389
        %v394 = vunpack.c.l.b16 %v379
        %v395 = vunpack.c.l.b16 %v380
        %v396 = vpack.c.b16 %v395, %v394
        %v401 = vunpack.c.l.b16 %v381
        %v402 = vunpack.c.l.b16 %v382
        %v403 = vunpack.c.l.b16 %v383
        %v404 = vunpack.c.l.b16 %v384
        %v405 = vpack.c.b16 %v402, %v401
        %v406 = vpack.c.b16 %v404, %v403
        %vm409 = vcmask 261120
        %v411 = vsel %vm409, %v396, 0
        %413 = vmatprep.subr.bf16.mxu0 0
        %414 = vmatpush1.bf16.msra.mxu0 0
        %415 = vmatprep.subr.bf16.mxu0 0
        %416 = vmatpush1.bf16.msra.mxu0 0
        %417 = vmatprep.subr.bf16.mxu0 0
        %418 = vmatpush1.bf16.msra.mxu0 0
        %419 = vmatprep.subr.bf16.mxu0 0
        %420 = vmatpush1.bf16.msra.mxu0 0
        %421 = vmatprep.subr.bf16.mxu0 0
        %422 = vmatpush1.bf16.msra.mxu0 0
        %423 = vmatprep.subr.bf16.mxu0 0
        %424 = vmatpush1.bf16.msra.mxu0 0
        %425 = vmatprep.subr.bf16.mxu0 0
        %426 = vmatpush1.bf16.msra.mxu0 %v406
        %427 = vmatprep.subr.bf16.mxu0 0
        %428 = vmatpush1.bf16.msra.mxu0 %v405
        %429 = vmatprep.subr.bf16.mxu0 0
        %430 = vmatpush2.bf16.msra.mxu0 0
        %431 = vmatprep.subr.bf16.mxu0 0
        %432 = vmatpush2.bf16.msra.mxu0 0
        %433 = vmatprep.subr.bf16.mxu0 0
        %434 = vmatpush2.bf16.msra.mxu0 0
        %435 = vmatprep.subr.bf16.mxu0 0
        %436 = vmatpush2.bf16.msra.mxu0 0
        %437 = vmatprep.subr.bf16.mxu0 0
        %438 = vmatpush2.bf16.msra.mxu0 0
        %439 = vmatprep.subr.bf16.mxu0 0
        %440 = vmatpush2.bf16.msra.mxu0 0
        %441 = vmatprep.subr.bf16.mxu0 0
        %442 = vmatpush2.bf16.msra.mxu0 0
        %443 = vmatprep.subr.bf16.mxu0 0
        %444 = vmatpush2.bf16.msra.mxu0 0
        %445 = vmatprep.mubr.bf16.mxu0 0
        %446 = vmatmul.mubr.bf16.gmra.mxu0 %v411
        %v447 = vpop.f32.mrf.mxu0
        %v448 = vadd.f32 %v390, %v447
        %v449 = vpop.f32.mrf.mxu0
        %v450 = vpop.f32.mrf.mxu0
        %v451 = vadd.f32 %v390, %v450
        %v452 = vpop.f32.mrf.mxu0
        %453 = vdwg.mxu0
        %v454 = vmax.f32 %v448, 0.0
        %v455 = vmax.f32 %v451, 0.0
        %v456 = vpack.c.bf16 %v455, %v454
        %v457 = vld [vmem:[#allocation2] sm:$0xf]
        %v458 = vld [vmem:[#allocation2 + $0x4] sm:$0xf]
        %v459 = vld [vmem:[#allocation2 + $0x8] sm:$0xf]
        %v460 = vld [vmem:[#allocation2 + $0xc] sm:$0xf]
        %v461 = vld [vmem:[#allocation2 + $0x10] sm:$0xf]
        %v462 = vld [vmem:[#allocation2 + $0x14] sm:$0xf]
        %v463 = vld [vmem:[#allocation2 + $0x18] sm:$0xf]
        %v464 = vld [vmem:[#allocation2 + $0x1c] sm:$0xf]
        %v465 = vld [vmem:[#allocation2 + $0x20] sm:$0xf]
        %v466 = vld [vmem:[#allocation2 + $0x24] sm:$0xf]
        %v467 = vld [vmem:[#allocation2 + $0x28] sm:$0xf]
        %v468 = vld [vmem:[#allocation2 + $0x2c] sm:$0xf]
        %v469 = vld [vmem:[#allocation2 + $0x30] sm:$0xf]
        %v470 = vld [vmem:[#allocation2 + $0x34] sm:$0xf]
        %v471 = vld [vmem:[#allocation2 + $0x38] sm:$0xf]
        %v472 = vld [vmem:[#allocation2 + $0x3c] sm:$0xf]
        %v473 = vld [vmem:[%s4] sm:$0x1]
        %v475 = vlaneseq
        %v476 = vshrl.u32 %v475, 7
        %v477 = vsub.s32 0, %v476
        %v478 = vrot.slane %v473, %v477
        %v496 = vunpack.c.l.b16 %v457
        %v497 = vunpack.c.l.b16 %v458
        %v498 = vunpack.c.l.b16 %v459
        %v499 = vunpack.c.l.b16 %v460
        %v500 = vunpack.c.l.b16 %v461
        %v501 = vunpack.c.l.b16 %v462
        %v502 = vunpack.c.l.b16 %v463
        %v503 = vunpack.c.l.b16 %v464
        %v504 = vunpack.c.l.b16 %v465
        %v505 = vunpack.c.l.b16 %v466
        %v506 = vunpack.c.l.b16 %v467
        %v507 = vunpack.c.l.b16 %v468
        %v508 = vunpack.c.l.b16 %v469
        %v509 = vunpack.c.l.b16 %v470
        %v510 = vunpack.c.l.b16 %v471
        %v511 = vunpack.c.l.b16 %v472
        %v512 = vpack.c.b16 %v497, %v496
        %v513 = vpack.c.b16 %v499, %v498
        %v514 = vpack.c.b16 %v501, %v500
        %v515 = vpack.c.b16 %v503, %v502
        %v516 = vpack.c.b16 %v505, %v504
        %v517 = vpack.c.b16 %v507, %v506
        %v518 = vpack.c.b16 %v509, %v508
        %v519 = vpack.c.b16 %v511, %v510
        %528 = vmatprep.subr.bf16.mxu0 0
        %529 = vmatpush1.bf16.msra.mxu0 %v519
        %530 = vmatprep.subr.bf16.mxu0 0
        %531 = vmatpush1.bf16.msra.mxu0 %v518
        %532 = vmatprep.subr.bf16.mxu0 0
        %533 = vmatpush1.bf16.msra.mxu0 %v517
        %534 = vmatprep.subr.bf16.mxu0 0
        %535 = vmatpush1.bf16.msra.mxu0 %v516
        %536 = vmatprep.subr.bf16.mxu0 0
        %537 = vmatpush1.bf16.msra.mxu0 %v515
        %538 = vmatprep.subr.bf16.mxu0 0
        %539 = vmatpush1.bf16.msra.mxu0 %v514
        %540 = vmatprep.subr.bf16.mxu0 0
        %541 = vmatpush1.bf16.msra.mxu0 %v513
        %542 = vmatprep.subr.bf16.mxu0 0
        %543 = vmatpush1.bf16.msra.mxu0 %v512
        %544 = vmatprep.subr.bf16.mxu0 0
        %545 = vmatpush2.bf16.msra.mxu0 0
        %546 = vmatprep.subr.bf16.mxu0 0
        %547 = vmatpush2.bf16.msra.mxu0 0
        %548 = vmatprep.subr.bf16.mxu0 0
        %549 = vmatpush2.bf16.msra.mxu0 0
        %550 = vmatprep.subr.bf16.mxu0 0
        %551 = vmatpush2.bf16.msra.mxu0 0
        %552 = vmatprep.subr.bf16.mxu0 0
        %553 = vmatpush2.bf16.msra.mxu0 0
        %554 = vmatprep.subr.bf16.mxu0 0
        %555 = vmatpush2.bf16.msra.mxu0 0
        %556 = vmatprep.subr.bf16.mxu0 0
        %557 = vmatpush2.bf16.msra.mxu0 0
        %558 = vmatprep.subr.bf16.mxu0 0
        %559 = vmatpush2.bf16.msra.mxu0 0
        %560 = vmatprep.mubr.bf16.mxu0 0
        %561 = vmatmul.mubr.bf16.gmra.mxu0 %v456
        %v562 = vpop.f32.mrf.mxu0
        %v563 = vadd.f32 %v478, %v562
        %v564 = vpop.f32.mrf.mxu0
        %v565 = vpop.f32.mrf.mxu0
        %v566 = vadd.f32 %v478, %v565
        %v567 = vpop.f32.mrf.mxu0
        %568 = vdwg.mxu0
        %v569 = vmax.f32 %v563, 0.0
        %v570 = vmax.f32 %v566, 0.0
        %v571 = vpack.c.bf16 %v570, %v569
        %v572 = vld [vmem:[#allocation5] sm:$0xf]
        %v573 = vld [vmem:[#allocation5 + $0x4] sm:$0xf]
        %v574 = vld [vmem:[#allocation5 + $0x8] sm:$0xf]
        %v575 = vld [vmem:[#allocation5 + $0xc] sm:$0xf]
        %v576 = vld [vmem:[#allocation5 + $0x10] sm:$0xf]
        %v577 = vld [vmem:[#allocation5 + $0x14] sm:$0xf]
        %v578 = vld [vmem:[#allocation5 + $0x18] sm:$0xf]
        %v579 = vld [vmem:[#allocation5 + $0x1c] sm:$0xf]
        %v580 = vld [vmem:[#allocation5 + $0x20] sm:$0xf]
        %v581 = vld [vmem:[#allocation5 + $0x24] sm:$0xf]
        %v582 = vld [vmem:[#allocation5 + $0x28] sm:$0xf]
        %v583 = vld [vmem:[#allocation5 + $0x2c] sm:$0xf]
        %v584 = vld [vmem:[#allocation5 + $0x30] sm:$0xf]
        %v585 = vld [vmem:[#allocation5 + $0x34] sm:$0xf]
        %v586 = vld [vmem:[#allocation5 + $0x38] sm:$0xf]
        %v587 = vld [vmem:[#allocation5 + $0x3c] sm:$0xf]
        %v588 = vld [vmem:[%s6] sm:$0x1]
        %v590 = vlaneseq
        %v591 = vshrl.u32 %v590, 7
        %v592 = vsub.s32 0, %v591
        %v593 = vrot.slane %v588, %v592
        %v611 = vunpack.c.l.b16 %v572
        %v612 = vunpack.c.l.b16 %v573
        %v613 = vunpack.c.l.b16 %v574
        %v614 = vunpack.c.l.b16 %v575
        %v615 = vunpack.c.l.b16 %v576
        %v616 = vunpack.c.l.b16 %v577
        %v617 = vunpack.c.l.b16 %v578
        %v618 = vunpack.c.l.b16 %v579
        %v619 = vunpack.c.l.b16 %v580
        %v620 = vunpack.c.l.b16 %v581
        %v621 = vunpack.c.l.b16 %v582
        %v622 = vunpack.c.l.b16 %v583
        %v623 = vunpack.c.l.b16 %v584
        %v624 = vunpack.c.l.b16 %v585
        %v625 = vunpack.c.l.b16 %v586
        %v626 = vunpack.c.l.b16 %v587
        %v627 = vpack.c.b16 %v612, %v611
        %v628 = vpack.c.b16 %v614, %v613
        %v629 = vpack.c.b16 %v616, %v615
        %v630 = vpack.c.b16 %v618, %v617
        %v631 = vpack.c.b16 %v620, %v619
        %v632 = vpack.c.b16 %v622, %v621
        %v633 = vpack.c.b16 %v624, %v623
        %v634 = vpack.c.b16 %v626, %v625
        %643 = vmatprep.subr.bf16.mxu0 0
        %644 = vmatpush1.bf16.msra.mxu0 %v634
        %645 = vmatprep.subr.bf16.mxu0 0
        %646 = vmatpush1.bf16.msra.mxu0 %v633
        %647 = vmatprep.subr.bf16.mxu0 0
        %648 = vmatpush1.bf16.msra.mxu0 %v632
        %649 = vmatprep.subr.bf16.mxu0 0
        %650 = vmatpush1.bf16.msra.mxu0 %v631
        %651 = vmatprep.subr.bf16.mxu0 0
        %652 = vmatpush1.bf16.msra.mxu0 %v630
        %653 = vmatprep.subr.bf16.mxu0 0
        %654 = vmatpush1.bf16.msra.mxu0 %v629
        %655 = vmatprep.subr.bf16.mxu0 0
        %656 = vmatpush1.bf16.msra.mxu0 %v628
        %657 = vmatprep.subr.bf16.mxu0 0
        %658 = vmatpush1.bf16.msra.mxu0 %v627
        %659 = vmatprep.subr.bf16.mxu0 0
        %660 = vmatpush2.bf16.msra.mxu0 0
        %661 = vmatprep.subr.bf16.mxu0 0
        %662 = vmatpush2.bf16.msra.mxu0 0
        %663 = vmatprep.subr.bf16.mxu0 0
        %664 = vmatpush2.bf16.msra.mxu0 0
        %665 = vmatprep.subr.bf16.mxu0 0
        %666 = vmatpush2.bf16.msra.mxu0 0
        %667 = vmatprep.subr.bf16.mxu0 0
        %668 = vmatpush2.bf16.msra.mxu0 0
        %669 = vmatprep.subr.bf16.mxu0 0
        %670 = vmatpush2.bf16.msra.mxu0 0
        %671 = vmatprep.subr.bf16.mxu0 0
        %672 = vmatpush2.bf16.msra.mxu0 0
        %673 = vmatprep.subr.bf16.mxu0 0
        %674 = vmatpush2.bf16.msra.mxu0 0
        %675 = vmatprep.mubr.bf16.mxu0 0
        %676 = vmatmul.mubr.bf16.gmra.mxu0 %v571
        %v677 = vpop.f32.mrf.mxu0
        %v678 = vadd.f32 %v593, %v677
        %v679 = vpop.f32.mrf.mxu0
        %v680 = vpop.f32.mrf.mxu0
        %v681 = vadd.f32 %v593, %v680
        %v682 = vpop.f32.mrf.mxu0
        %683 = vdwg.mxu0
        %v684 = vmax.f32 %v678, 0.0
        %v685 = vmax.f32 %v681, 0.0
        %v686 = vpack.c.bf16 %v685, %v684
        %v687 = vld [vmem:[#allocation7] sm:$0xf]
        %v688 = vld [vmem:[#allocation7 + $0x4] sm:$0xf]
        %v689 = vld [vmem:[#allocation7 + $0x8] sm:$0xf]
        %v690 = vld [vmem:[#allocation7 + $0xc] sm:$0xf]
        %v691 = vld [vmem:[#allocation7 + $0x10] sm:$0xf]
        %v692 = vld [vmem:[#allocation7 + $0x14] sm:$0xf]
        %v693 = vld [vmem:[#allocation7 + $0x18] sm:$0xf]
        %v694 = vld [vmem:[#allocation7 + $0x1c] sm:$0xf]
        %v695 = vld [vmem:[#allocation7 + $0x20] sm:$0xf]
        %v696 = vld [vmem:[#allocation7 + $0x24] sm:$0xf]
        %v697 = vld [vmem:[#allocation7 + $0x28] sm:$0xf]
        %v698 = vld [vmem:[#allocation7 + $0x2c] sm:$0xf]
        %v699 = vld [vmem:[#allocation7 + $0x30] sm:$0xf]
        %v700 = vld [vmem:[#allocation7 + $0x34] sm:$0xf]
        %v701 = vld [vmem:[#allocation7 + $0x38] sm:$0xf]
        %v702 = vld [vmem:[#allocation7 + $0x3c] sm:$0xf]
        %v703 = vld [vmem:[%s8] sm:$0x1]
        %v705 = vlaneseq
        %v706 = vshrl.u32 %v705, 7
        %v707 = vsub.s32 0, %v706
        %v708 = vrot.slane %v703, %v707
        %v726 = vunpack.c.l.b16 %v687
        %v727 = vunpack.c.l.b16 %v688
        %v728 = vunpack.c.l.b16 %v689
        %v729 = vunpack.c.l.b16 %v690
        %v730 = vunpack.c.l.b16 %v691
        %v731 = vunpack.c.l.b16 %v692
        %v732 = vunpack.c.l.b16 %v693
        %v733 = vunpack.c.l.b16 %v694
        %v734 = vunpack.c.l.b16 %v695
        %v735 = vunpack.c.l.b16 %v696
        %v736 = vunpack.c.l.b16 %v697
        %v737 = vunpack.c.l.b16 %v698
        %v738 = vunpack.c.l.b16 %v699
        %v739 = vunpack.c.l.b16 %v700
        %v740 = vunpack.c.l.b16 %v701
        %v741 = vunpack.c.l.b16 %v702
        %v742 = vpack.c.b16 %v727, %v726
        %v743 = vpack.c.b16 %v729, %v728
        %v744 = vpack.c.b16 %v731, %v730
        %v745 = vpack.c.b16 %v733, %v732
        %v746 = vpack.c.b16 %v735, %v734
        %v747 = vpack.c.b16 %v737, %v736
        %v748 = vpack.c.b16 %v739, %v738
        %v749 = vpack.c.b16 %v741, %v740
        %758 = vmatprep.subr.bf16.mxu0 0
        %759 = vmatpush1.bf16.msra.mxu0 %v749
        %760 = vmatprep.subr.bf16.mxu0 0
        %761 = vmatpush1.bf16.msra.mxu0 %v748
        %762 = vmatprep.subr.bf16.mxu0 0
        %763 = vmatpush1.bf16.msra.mxu0 %v747
        %764 = vmatprep.subr.bf16.mxu0 0
        %765 = vmatpush1.bf16.msra.mxu0 %v746
        %766 = vmatprep.subr.bf16.mxu0 0
        %767 = vmatpush1.bf16.msra.mxu0 %v745
        %768 = vmatprep.subr.bf16.mxu0 0
        %769 = vmatpush1.bf16.msra.mxu0 %v744
        %770 = vmatprep.subr.bf16.mxu0 0
        %771 = vmatpush1.bf16.msra.mxu0 %v743
        %772 = vmatprep.subr.bf16.mxu0 0
        %773 = vmatpush1.bf16.msra.mxu0 %v742
        %774 = vmatprep.subr.bf16.mxu0 0
        %775 = vmatpush2.bf16.msra.mxu0 0
        %776 = vmatprep.subr.bf16.mxu0 0
        %777 = vmatpush2.bf16.msra.mxu0 0
        %778 = vmatprep.subr.bf16.mxu0 0
        %779 = vmatpush2.bf16.msra.mxu0 0
        %780 = vmatprep.subr.bf16.mxu0 0
        %781 = vmatpush2.bf16.msra.mxu0 0
        %782 = vmatprep.subr.bf16.mxu0 0
        %783 = vmatpush2.bf16.msra.mxu0 0
        %784 = vmatprep.subr.bf16.mxu0 0
        %785 = vmatpush2.bf16.msra.mxu0 0
        %786 = vmatprep.subr.bf16.mxu0 0
        %787 = vmatpush2.bf16.msra.mxu0 0
        %788 = vmatprep.subr.bf16.mxu0 0
        %789 = vmatpush2.bf16.msra.mxu0 0
        %790 = vmatprep.mubr.bf16.mxu0 0
        %791 = vmatmul.mubr.bf16.gmra.mxu0 %v686
        %v792 = vpop.f32.mrf.mxu0
        %v793 = vadd.f32 %v708, %v792
        %v794 = vpop.f32.mrf.mxu0
        %v795 = vpop.f32.mrf.mxu0
        %v796 = vadd.f32 %v708, %v795
        %v797 = vpop.f32.mrf.mxu0
        %798 = vdwg.mxu0
        %799 = vst [vmem:[%s370] sm:$0xff] %v793
        %800 = vst [vmem:[%s370 + $0x8] sm:$0xff] %v796
        %s801 = sand.u32 %s227, 1
        %s802 = scalar_lea.sflag [#allocation4], %s801
        %s803 = sand.u32 %s227, 1
        %s804 = smul.addr %s803, 16
        %s805 = scalar_lea.vmem [#allocation8], %s804
        // Predicated region
        $region69: #{tpu_custom_call.1} parent=55 // pred_check
          %p806 = pneg %p237
        $region70: #{tpu_custom_call.1} parent=55 // pred_check_branch
          %808 = sbr.rel (%p806) target = $region72
        $region71: #{tpu_custom_call.1} parent=55 // pred_region
          %s809 = smul.u32 2, %s25
          %s811 = ssub.s32 256, 256
          %812 = vsyncadd %s802, %s811
          %s813 = smul.addr %s809, 128
          %s814 = scalar_lea.hbm %s9, %s813
          %s815 = sshll.u32 %s805, 4
          %s816 = int_to_ptr.vmem [resolvable:$true] %s815
          %821 = dma.vmem_to_hbm [thread:$0]  %s816, 256, %s814, %s802, 128, 128, 8
        $region72: #{tpu_custom_call.1} parent=55 // pred_fallthru
          _
      $region56: #{tpu_custom_call.1} parent=5 // pred_fallthru
        _
      %p822 = scmp.le.s32.totalorder 2, %s20
      // Predicated region
      $region73: #{tpu_custom_call.1} parent=5 // pred_check
        %p823 = pneg %p822
      $region74: #{tpu_custom_call.1} parent=5 // pred_check_branch
        %825 = sbr.rel (%p823) target = $region76
      $region75: #{tpu_custom_call.1} parent=5 // pred_region
        %s826 = ssub.s32 %s20, 2
        // Predicated region
        $region77: #{tpu_custom_call.1} parent=75 // pred_check
          %p827 = pneg %p243
        $region78: #{tpu_custom_call.1} parent=75 // pred_check_branch
          %829 = sbr.rel (%p827) target = $region80
        $region79: #{tpu_custom_call.1} parent=75 // pred_region
          %s830 = sand.u32 %s228, 1
          %s831 = scalar_lea.sflag [#allocation4], %s830
          %s832 = sand.u32 %s228, 1
          %s833 = smul.addr %s832, 16
          %s834 = scalar_lea.vmem [#allocation8], %s833
          %835 = dma.done %s831, 256
        $region80: #{tpu_custom_call.1} parent=75 // pred_fallthru
          _
      $region76: #{tpu_custom_call.1} parent=5 // pred_fallthru
        _
    $region6: #{tpu_custom_call.1} parent=1 // loop_footer
      %s24 = sadd.s32 1, %s20
    $region7: #{tpu_custom_call.1} parent=1 // loop_footer_branch
      %19 = sbr.rel target = $region3
    $region8: #{tpu_custom_call.1} parent=1 // loop_exit
      _
    %836 = vsyncpa [#allocation3], 1
    %s837 = scalar_lea.sflag [#allocation3], 1
    %838 = vsyncpa %s837, 1
    %839 = vsyncpa [#allocation6], 1
    %840 = vsyncpa [#allocation4], 1
    %s841 = scalar_lea.sflag [#allocation4], 1
    %842 = vsyncpa %s841, 1

</llo_original>
